<compile_context>
chip_gen: v7x
topology: tpu7x:2x2x1
jax: 0.10.0
libtpu: 0.0.40
codegen_flags: <defaults>
</compile_context>

<pallas_src>
import jax
import jax.numpy as jnp
from jax.experimental import pallas as pl
from jax.experimental.pallas import tpu as pltpu

d_model = 64
d_ff = 512


def _round_up(x, m):
    return (x + m - 1) // m * m


def _ffn_kernel(x_ref, w1_ref, b1_ref, w2_ref, b2_ref, o_ref):
    # x_ref:  (tm, d_model)   VMEM tile of tokens
    # w1_ref: (d_model, d_ff) full weight (resident)
    # b1_ref: (1, d_ff)
    # w2_ref: (d_ff, d_model) full weight (resident)
    # b2_ref: (1, d_model)
    x = x_ref[...]
    h = jnp.dot(x, w1_ref[...], preferred_element_type=jnp.float32) + b1_ref[...]
    h = jnp.maximum(h, 0.0)                                   # ReLU
    y = jnp.dot(h.astype(w2_ref.dtype), w2_ref[...],
                preferred_element_type=jnp.float32) + b2_ref[...]
    o_ref[...] = y.astype(o_ref.dtype)


def poswise_ffn(x, w1, b1, w2, b2, *, tm=1024):
    """x: [batch, seq, d_model] float32 -> [batch, seq, d_model]."""
    B, S, D = x.shape
    assert D == d_model
    M = B * S

    # Effective tile: big (MXU / pipeline friendly) but never over-padding tiny
    # inputs.  Always a multiple of 8 (f32 sublanes); tm default is a multiple
    # of 256 so the MXU M edge is full on large inputs.
    tm_eff = min(tm, _round_up(M, 8))
    M_pad = _round_up(M, tm_eff)

    x2d = x.reshape(M, D)
    if M_pad != M:
        x2d = jnp.pad(x2d, ((0, M_pad - M), (0, 0)))

    b1_2d = b1.reshape(1, d_ff)
    b2_2d = b2.reshape(1, d_model)

    weight_bytes = (d_model * d_ff + d_ff + d_ff * d_model + d_model) * 4
    cost = pl.CostEstimate(
        flops=4 * M_pad * d_model * d_ff,                 # two matmuls
        transcendentals=0,
        bytes_accessed=M_pad * d_model * 4 * 2 + weight_bytes,
    )

    out2d = pl.pallas_call(
        _ffn_kernel,
        out_shape=jax.ShapeDtypeStruct((M_pad, d_model), x.dtype),
        grid_spec=pltpu.PrefetchScalarGridSpec(
            num_scalar_prefetch=0,
            grid=(M_pad // tm_eff,),
            in_specs=[
                pl.BlockSpec((tm_eff, d_model), lambda i: (i, 0)),   # x tile
                pl.BlockSpec((d_model, d_ff), lambda i: (0, 0)),     # w1 (full)
                pl.BlockSpec((1, d_ff), lambda i: (0, 0)),           # b1
                pl.BlockSpec((d_ff, d_model), lambda i: (0, 0)),     # w2 (full)
                pl.BlockSpec((1, d_model), lambda i: (0, 0)),        # b2
            ],
            out_specs=pl.BlockSpec((tm_eff, d_model), lambda i: (i, 0)),
        ),
        compiler_params=pltpu.CompilerParams(
            dimension_semantics=("parallel",)),
        cost_estimate=cost,
    )(x2d, w1, b1_2d, w2, b2_2d)

    if M_pad != M:
        out2d = out2d[:M]
    return out2d.reshape(B, S, D)


def init_params(key):
    """Deterministic init mirroring nn.Linear default (uniform +-1/sqrt(fan_in))."""
    k1, k2, k3, k4 = jax.random.split(key, 4)
    lim1 = 1.0 / (d_model ** 0.5)
    lim2 = 1.0 / (d_ff ** 0.5)
    w1 = jax.random.uniform(k1, (d_model, d_ff), jnp.float32, -lim1, lim1)
    b1 = jax.random.uniform(k2, (d_ff,), jnp.float32, -lim1, lim1)
    w2 = jax.random.uniform(k3, (d_ff, d_model), jnp.float32, -lim2, lim2)
    b2 = jax.random.uniform(k4, (d_model,), jnp.float32, -lim2, lim2)
    return w1, b1, w2, b2


def _ref(x, w1, b1, w2, b2):
    return jnp.maximum(x @ w1 + b1, 0.0) @ w2 + b2


if __name__ == "__main__":
    key = jax.random.PRNGKey(0)
    kx, kx2, kp = jax.random.split(key, 3)

    w1, b1, w2, b2 = init_params(kp)

    # Small canonical shape from the module's typical usage.
    batch, seq = 2, 8
    x = jax.random.normal(kx, (batch, seq, d_model), jnp.float32)
    y = jax.block_until_ready(poswise_ffn(x, w1, b1, w2, b2))
    assert y.shape == (batch, seq, d_model)
    assert jnp.allclose(y, _ref(x, w1, b1, w2, b2), atol=1e-4, rtol=1e-4)

    # Ragged token count to exercise the padding / tiling path.
    x2 = jax.random.normal(kx2, (3, 37, d_model), jnp.float32)
    y2 = jax.block_until_ready(poswise_ffn(x2, w1, b1, w2, b2))
    assert y2.shape == (3, 37, d_model)
    assert jnp.allclose(y2, _ref(x2, w1, b1, w2, b2), atol=1e-4, rtol=1e-4)

    print("KERNEL_OK")
</pallas_src>

<mosaic_0001>
module attributes {stable_mosaic.version = 11 : i64} {
  func.func @_ffn_kernel(%arg0: i32, %arg1: memref<16x64xf32, #tpu.memory_space<vmem>>, %arg2: memref<64x512xf32, #tpu.memory_space<vmem>>, %arg3: memref<1x512xf32, #tpu.memory_space<vmem>>, %arg4: memref<512x64xf32, #tpu.memory_space<vmem>>, %arg5: memref<1x64xf32, #tpu.memory_space<vmem>>, %arg6: memref<16x64xf32, #tpu.memory_space<vmem>>) attributes {dimension_semantics = [#tpu.dimension_semantics<parallel>], iteration_bounds = array<i64: 1>, scalar_prefetch = 0 : i64, scratch_operands = 0 : i64, tpu.core_type = #tpu.core_type<tc>, window_params = [{transform_indices = @transform_0, window_bounds = array<i64: 16, 64>}, {pipeline_mode = #tpu.pipeline_mode<synchronous>, transform_indices = @transform_1, window_bounds = array<i64: 64, 512>}, {pipeline_mode = #tpu.pipeline_mode<synchronous>, transform_indices = @transform_2, window_bounds = array<i64: 1, 512>}, {pipeline_mode = #tpu.pipeline_mode<synchronous>, transform_indices = @transform_3, window_bounds = array<i64: 512, 64>}, {pipeline_mode = #tpu.pipeline_mode<synchronous>, transform_indices = @transform_4, window_bounds = array<i64: 1, 64>}, {transform_indices = @transform_5, window_bounds = array<i64: 16, 64>}]} {
    %c0 = arith.constant 0 : index
    %c0_0 = arith.constant 0 : index
    %0 = vector.load %arg1[%c0, %c0_0] : memref<16x64xf32, #tpu.memory_space<vmem>>, vector<16x64xf32>
    %c0_1 = arith.constant 0 : index
    %c0_2 = arith.constant 0 : index
    %1 = vector.load %arg2[%c0_1, %c0_2] : memref<64x512xf32, #tpu.memory_space<vmem>>, vector<64x512xf32>
    %cst = arith.constant dense<0.000000e+00> : vector<16x512xf32>
    %2 = tpu.matmul %0, %1, %cst {dimension_numbers = #tpu.dot_dimension_numbers<[1], [0], [0], [1], [0, 0, 1, 1], [], []>} : vector<16x64xf32>, vector<64x512xf32>, vector<16x512xf32> -> vector<16x512xf32>
    %c0_3 = arith.constant 0 : index
    %c0_4 = arith.constant 0 : index
    %3 = vector.load %arg3[%c0_3, %c0_4] : memref<1x512xf32, #tpu.memory_space<vmem>>, vector<1x512xf32>
    %4 = vector.broadcast %3 : vector<1x512xf32> to vector<16x512xf32>
    %5 = arith.addf %2, %4 : vector<16x512xf32>
    %cst_5 = arith.constant 0.000000e+00 : f32
    %6 = vector.broadcast %cst_5 : f32 to vector<16x512xf32>
    %7 = arith.maximumf %5, %6 : vector<16x512xf32>
    %c0_6 = arith.constant 0 : index
    %c0_7 = arith.constant 0 : index
    %8 = vector.load %arg4[%c0_6, %c0_7] : memref<512x64xf32, #tpu.memory_space<vmem>>, vector<512x64xf32>
    %cst_8 = arith.constant dense<0.000000e+00> : vector<16x64xf32>
    %9 = tpu.matmul %7, %8, %cst_8 {dimension_numbers = #tpu.dot_dimension_numbers<[1], [0], [0], [1], [0, 0, 1, 1], [], []>} : vector<16x512xf32>, vector<512x64xf32>, vector<16x64xf32> -> vector<16x64xf32>
    %c0_9 = arith.constant 0 : index
    %c0_10 = arith.constant 0 : index
    %10 = vector.load %arg5[%c0_9, %c0_10] : memref<1x64xf32, #tpu.memory_space<vmem>>, vector<1x64xf32>
    %11 = vector.broadcast %10 : vector<1x64xf32> to vector<16x64xf32>
    %12 = arith.addf %9, %11 : vector<16x64xf32>
    %c0_11 = arith.constant 0 : index
    %c0_12 = arith.constant 0 : index
    %13 = vector.load %arg6[%c0_11, %c0_12] : memref<16x64xf32, #tpu.memory_space<vmem>>, vector<16x64xf32>
    tpu.vector_store %arg6[%c0_11, %c0_12], %12 {strides = array<i32>} : memref<16x64xf32, #tpu.memory_space<vmem>>, vector<16x64xf32>,
    return
  }
  func.func @transform_0(%arg0: i32) -> (i32, i32) {
    %c0_i32 = arith.constant 0 : i32
    %c0_i32_0 = arith.constant 0 : i32
    return %arg0, %c0_i32 : i32, i32
  }
  func.func @transform_1(%arg0: i32) -> (i32, i32) {
    %c0_i32 = arith.constant 0 : i32
    %c0_i32_0 = arith.constant 0 : i32
    %c0_i32_1 = arith.constant 0 : i32
    return %c0_i32, %c0_i32_0 : i32, i32
  }
  func.func @transform_2(%arg0: i32) -> (i32, i32) {
    %c0_i32 = arith.constant 0 : i32
    %c0_i32_0 = arith.constant 0 : i32
    %c0_i32_1 = arith.constant 0 : i32
    return %c0_i32, %c0_i32_0 : i32, i32
  }
  func.func @transform_3(%arg0: i32) -> (i32, i32) {
    %c0_i32 = arith.constant 0 : i32
    %c0_i32_0 = arith.constant 0 : i32
    %c0_i32_1 = arith.constant 0 : i32
    return %c0_i32, %c0_i32_0 : i32, i32
  }
  func.func @transform_4(%arg0: i32) -> (i32, i32) {
    %c0_i32 = arith.constant 0 : i32
    %c0_i32_0 = arith.constant 0 : i32
    %c0_i32_1 = arith.constant 0 : i32
    return %c0_i32, %c0_i32_0 : i32, i32
  }
  func.func @transform_5(%arg0: i32) -> (i32, i32) {
    %c0_i32 = arith.constant 0 : i32
    %c0_i32_0 = arith.constant 0 : i32
    return %arg0, %c0_i32 : i32, i32
  }
}

</mosaic_0001>

<llo_original>
// kernel: tpu_custom_call.1
$region0: #{tpu_custom_call.1}
  #allocation0 [shape = 'u32[]', space=smem, size = 0x4, offset = 0x4, fixed_abs, tag = 'smem constant byte address 0x4 - core index']
  #allocation1 [shape = 'u32[144,128]{1,0:T(1,128)}', space=vmem, size = 0x12000, scoped, tag = 'internal scratch']
  %s0 = inlined_call_operand.vmem [shape: f32[16,64], index: 0, kind: input, shape index: {}]
  %s1 = inlined_call_operand.vmem [shape: f32[64,512], index: 1, kind: input, shape index: {}]
  %s2 = inlined_call_operand.vmem [shape: f32[1,512], index: 2, kind: input, shape index: {}]
  %s3 = inlined_call_operand.vmem [shape: f32[512,64], index: 3, kind: input, shape index: {}]
  %s4 = inlined_call_operand.vmem [shape: f32[1,64], index: 4, kind: input, shape index: {}]
  %s5 = inlined_call_operand.hbm [shape: f32[16,64], index: 5, kind: output, shape index: {}]
  %s6 = sld [smem:[#allocation0]]
  $region30: #{tpu_custom_call.1} parent=0
    _
  %s8 = ssub.s32 1, %s6
  %s9 = scalar_select 0, %s8, %s6
  $region1: #{tpu_custom_call.1} parent=0
    #allocation2 [shape = 'u8[8192]{0}', space=vmem, size = 0x2000, scoped, tag = 'output window, operand 0, single buffered']
    #allocation3 [shape = 's32[1]{0}', space=sflag, size = 0x4, scoped, tag = 'scoped memory for tpu_custom_call.1']
    %10 = vsyncpa [#allocation3], 0
    // Predicated region
    $region2: #{tpu_custom_call.1} parent=1 // pred_check
      _
    $region3: #{tpu_custom_call.1} parent=1 // pred_check_branch
      %12 = sbr.rel (0) target = $region5
    $region4: #{tpu_custom_call.1} parent=1 // pred_region
      _
    $region5: #{tpu_custom_call.1} parent=1 // pred_fallthru
      _
    // Predicated region
    $region6: #{tpu_custom_call.1} parent=1 // pred_check
      _
    $region7: #{tpu_custom_call.1} parent=1 // pred_check_branch
      %14 = sbr.rel (0) target = $region9
    $region8: #{tpu_custom_call.1} parent=1 // pred_region
      _
    $region9: #{tpu_custom_call.1} parent=1 // pred_fallthru
      _
    // Predicated region
    $region10: #{tpu_custom_call.1} parent=1 // pred_check
      _
    $region11: #{tpu_custom_call.1} parent=1 // pred_check_branch
      %16 = sbr.rel (0) target = $region13
    $region12: #{tpu_custom_call.1} parent=1 // pred_region
      _
    $region13: #{tpu_custom_call.1} parent=1 // pred_fallthru
      _
    // Predicated region
    $region14: #{tpu_custom_call.1} parent=1 // pred_check
      _
    $region15: #{tpu_custom_call.1} parent=1 // pred_check_branch
      %18 = sbr.rel (0) target = $region17
    $region16: #{tpu_custom_call.1} parent=1 // pred_region
      _
    $region17: #{tpu_custom_call.1} parent=1 // pred_fallthru
      _
    // Predicated region
    $region18: #{tpu_custom_call.1} parent=1 // pred_check
      _
    $region19: #{tpu_custom_call.1} parent=1 // pred_check_branch
      %20 = sbr.rel (0) target = $region21
    $region20: #{tpu_custom_call.1} parent=1 // pred_region
      _
    $region21: #{tpu_custom_call.1} parent=1 // pred_fallthru
      _
    %v21 = vld [vmem:[%s0] sm:$0xff]
    %v22 = vld [vmem:[%s0 + $0x8] sm:$0xff]
    %v23 = vld [vmem:[%s1] sm:$0xff]
    %v24 = vld [vmem:[%s1 + $0x8] sm:$0xff]
    %v25 = vld [vmem:[%s1 + $0x10] sm:$0xff]
    %v26 = vld [vmem:[%s1 + $0x18] sm:$0xff]
    %v27 = vld [vmem:[%s1 + $0x20] sm:$0xff]
    %v28 = vld [vmem:[%s1 + $0x28] sm:$0xff]
    %v29 = vld [vmem:[%s1 + $0x30] sm:$0xff]
    %v30 = vld [vmem:[%s1 + $0x38] sm:$0xff]
    %v31 = vld [vmem:[%s1 + $0x40] sm:$0xff]
    %v32 = vld [vmem:[%s1 + $0x48] sm:$0xff]
    %v33 = vld [vmem:[%s1 + $0x50] sm:$0xff]
    %v34 = vld [vmem:[%s1 + $0x58] sm:$0xff]
    %v35 = vld [vmem:[%s1 + $0x60] sm:$0xff]
    %v36 = vld [vmem:[%s1 + $0x68] sm:$0xff]
    %v37 = vld [vmem:[%s1 + $0x70] sm:$0xff]
    %v38 = vld [vmem:[%s1 + $0x78] sm:$0xff]
    %v39 = vld [vmem:[%s1 + $0x80] sm:$0xff]
    %v40 = vld [vmem:[%s1 + $0x88] sm:$0xff]
    %v41 = vld [vmem:[%s1 + $0x90] sm:$0xff]
    %v42 = vld [vmem:[%s1 + $0x98] sm:$0xff]
    %v43 = vld [vmem:[%s1 + $0xa0] sm:$0xff]
    %v44 = vld [vmem:[%s1 + $0xa8] sm:$0xff]
    %v45 = vld [vmem:[%s1 + $0xb0] sm:$0xff]
    %v46 = vld [vmem:[%s1 + $0xb8] sm:$0xff]
    %v47 = vld [vmem:[%s1 + $0xc0] sm:$0xff]
    %v48 = vld [vmem:[%s1 + $0xc8] sm:$0xff]
    %v49 = vld [vmem:[%s1 + $0xd0] sm:$0xff]
    %v50 = vld [vmem:[%s1 + $0xd8] sm:$0xff]
    %v51 = vld [vmem:[%s1 + $0xe0] sm:$0xff]
    %v52 = vld [vmem:[%s1 + $0xe8] sm:$0xff]
    %v53 = vld [vmem:[%s1 + $0xf0] sm:$0xff]
    %v54 = vld [vmem:[%s1 + $0xf8] sm:$0xff]
    %v55 = vld [vmem:[%s2] sm:$0xf]
    %v57 = vlaneseq
    %v58 = vshrl.u32 %v57, 7
    %v59 = vsub.s32 0, %v58
    %v60 = vrot.slane %v55, %v59
    %v61 = vlaneseq
    %v62 = vshrl.u32 %v61, 7
    %v63 = vsub.s32 1, %v62
    %v64 = vrot.slane %v55, %v63
    %v65 = vlaneseq
    %v66 = vshrl.u32 %v65, 7
    %v67 = vsub.s32 2, %v66
    %v68 = vrot.slane %v55, %v67
    %v69 = vlaneseq
    %v70 = vshrl.u32 %v69, 7
    %v71 = vsub.s32 3, %v70
    %v72 = vrot.slane %v55, %v71
    %vm77 = vcmask 523264
    %v79 = vsel %vm77, %v21, 0
    %v82 = vsel %vm77, %v22, 0
    %84 = vmatprep.subr.mxu0 %v24
    %85 = vmatpush1.msra.mxu0 %v23
    %86 = vmatprep.subr.mxu0 %v28
    %87 = vmatpush1.msra.mxu0 %v27
    %88 = vmatprep.subr.mxu0 %v32
    %89 = vmatpush1.msra.mxu0 %v31
    %90 = vmatprep.subr.mxu0 %v36
    %91 = vmatpush1.msra.mxu0 %v35
    %92 = vmatprep.subr.mxu0 %v40
    %93 = vmatpush1.msra.mxu0 %v39
    %94 = vmatprep.subr.mxu0 %v44
    %95 = vmatpush1.msra.mxu0 %v43
    %96 = vmatprep.subr.mxu0 %v48
    %97 = vmatpush1.msra.mxu0 %v47
    %98 = vmatprep.subr.mxu0 %v52
    %99 = vmatpush1.msra.mxu0 %v51
    %100 = vmatprep.subr.mxu0 0.0
    %101 = vmatpush1.msra.mxu0 0.0
    %102 = vmatprep.subr.mxu0 0.0
    %103 = vmatpush1.msra.mxu0 0.0
    %104 = vmatprep.subr.mxu0 0.0
    %105 = vmatpush1.msra.mxu0 0.0
    %106 = vmatprep.subr.mxu0 0.0
    %107 = vmatpush1.msra.mxu0 0.0
    %108 = vmatprep.subr.mxu0 0.0
    %109 = vmatpush1.msra.mxu0 0.0
    %110 = vmatprep.subr.mxu0 0.0
    %111 = vmatpush1.msra.mxu0 0.0
    %112 = vmatprep.subr.mxu0 0.0
    %113 = vmatpush1.msra.mxu0 0.0
    %114 = vmatprep.subr.mxu0 0.0
    %115 = vmatpush1.msra.mxu0 0.0
    %116 = vmatprep.subr.mxu0 0.0
    %117 = vmatpush1.msra.mxu0 0.0
    %118 = vmatprep.subr.mxu0 0.0
    %119 = vmatpush1.msra.mxu0 0.0
    %120 = vmatprep.subr.mxu0 0.0
    %121 = vmatpush1.msra.mxu0 0.0
    %122 = vmatprep.subr.mxu0 0.0
    %123 = vmatpush1.msra.mxu0 0.0
    %124 = vmatprep.subr.mxu0 0.0
    %125 = vmatpush1.msra.mxu0 0.0
    %126 = vmatprep.subr.mxu0 0.0
    %127 = vmatpush1.msra.mxu0 0.0
    %128 = vmatprep.subr.mxu0 0.0
    %129 = vmatpush1.msra.mxu0 0.0
    %130 = vmatprep.subr.mxu0 0.0
    %131 = vmatpush1.msra.mxu0 0.0
    %132 = vmatprep.subr.mxu0 0.0
    %133 = vmatpush1.msra.mxu0 0.0
    %134 = vmatprep.subr.mxu0 0.0
    %135 = vmatpush1.msra.mxu0 0.0
    %136 = vmatprep.subr.mxu0 0.0
    %137 = vmatpush1.msra.mxu0 0.0
    %138 = vmatprep.subr.mxu0 0.0
    %139 = vmatpush1.msra.mxu0 0.0
    %140 = vmatprep.subr.mxu0 0.0
    %141 = vmatpush1.msra.mxu0 0.0
    %142 = vmatprep.subr.mxu0 0.0
    %143 = vmatpush1.msra.mxu0 0.0
    %144 = vmatprep.subr.mxu0 0.0
    %145 = vmatpush1.msra.mxu0 0.0
    %146 = vmatprep.subr.mxu0 0.0
    %147 = vmatpush1.msra.mxu0 0.0
    %148 = vmatprep.mubr.f32.mxu0 0.0
    %149 = vmatmul.mubr.f32.gmra.mrb[0].mxu0 %v79
    %v150 = vpop.f32.mrb[0].mxu0
    %v151 = vadd.f32 %v60, %v150
    %v152 = vpop.f32.mrb[0].mxu0
    %v153 = vadd.f32 %v64, %v152
    %154 = vmatprep.mubr.f32.mxu0 0.0
    %155 = vmatmul.mubr.f32.gmra.mrb[0].mxu0 %v82
    %v156 = vpop.f32.mrb[0].mxu0
    %v157 = vadd.f32 %v60, %v156
    %v158 = vpop.f32.mrb[0].mxu0
    %v159 = vadd.f32 %v64, %v158
    %160 = vdwg.mxu0
    %161 = vmatprep.subr.mxu0 %v26
    %162 = vmatpush1.msra.mxu0 %v25
    %163 = vmatprep.subr.mxu0 %v30
    %164 = vmatpush1.msra.mxu0 %v29
    %165 = vmatprep.subr.mxu0 %v34
    %166 = vmatpush1.msra.mxu0 %v33
    %167 = vmatprep.subr.mxu0 %v38
    %168 = vmatpush1.msra.mxu0 %v37
    %169 = vmatprep.subr.mxu0 %v42
    %170 = vmatpush1.msra.mxu0 %v41
    %171 = vmatprep.subr.mxu0 %v46
    %172 = vmatpush1.msra.mxu0 %v45
    %173 = vmatprep.subr.mxu0 %v50
    %174 = vmatpush1.msra.mxu0 %v49
    %175 = vmatprep.subr.mxu0 %v54
    %176 = vmatpush1.msra.mxu0 %v53
    %177 = vmatprep.subr.mxu0 0.0
    %178 = vmatpush1.msra.mxu0 0.0
    %179 = vmatprep.subr.mxu0 0.0
    %180 = vmatpush1.msra.mxu0 0.0
    %181 = vmatprep.subr.mxu0 0.0
    %182 = vmatpush1.msra.mxu0 0.0
    %183 = vmatprep.subr.mxu0 0.0
    %184 = vmatpush1.msra.mxu0 0.0
    %185 = vmatprep.subr.mxu0 0.0
    %186 = vmatpush1.msra.mxu0 0.0
    %187 = vmatprep.subr.mxu0 0.0
    %188 = vmatpush1.msra.mxu0 0.0
    %189 = vmatprep.subr.mxu0 0.0
    %190 = vmatpush1.msra.mxu0 0.0
    %191 = vmatprep.subr.mxu0 0.0
    %192 = vmatpush1.msra.mxu0 0.0
    %193 = vmatprep.subr.mxu0 0.0
    %194 = vmatpush1.msra.mxu0 0.0
    %195 = vmatprep.subr.mxu0 0.0
    %196 = vmatpush1.msra.mxu0 0.0
    %197 = vmatprep.subr.mxu0 0.0
    %198 = vmatpush1.msra.mxu0 0.0
    %199 = vmatprep.subr.mxu0 0.0
    %200 = vmatpush1.msra.mxu0 0.0
    %201 = vmatprep.subr.mxu0 0.0
    %202 = vmatpush1.msra.mxu0 0.0
    %203 = vmatprep.subr.mxu0 0.0
    %204 = vmatpush1.msra.mxu0 0.0
    %205 = vmatprep.subr.mxu0 0.0
    %206 = vmatpush1.msra.mxu0 0.0
    %207 = vmatprep.subr.mxu0 0.0
    %208 = vmatpush1.msra.mxu0 0.0
    %209 = vmatprep.subr.mxu0 0.0
    %210 = vmatpush1.msra.mxu0 0.0
    %211 = vmatprep.subr.mxu0 0.0
    %212 = vmatpush1.msra.mxu0 0.0
    %213 = vmatprep.subr.mxu0 0.0
    %214 = vmatpush1.msra.mxu0 0.0
    %215 = vmatprep.subr.mxu0 0.0
    %216 = vmatpush1.msra.mxu0 0.0
    %217 = vmatprep.subr.mxu0 0.0
    %218 = vmatpush1.msra.mxu0 0.0
    %219 = vmatprep.subr.mxu0 0.0
    %220 = vmatpush1.msra.mxu0 0.0
    %221 = vmatprep.subr.mxu0 0.0
    %222 = vmatpush1.msra.mxu0 0.0
    %223 = vmatprep.subr.mxu0 0.0
    %224 = vmatpush1.msra.mxu0 0.0
    %225 = vmatprep.mubr.f32.mxu0 0.0
    %226 = vmatmul.mubr.f32.gmra.mrb[0].mxu0 %v79
    %v227 = vpop.f32.mrb[0].mxu0
    %v228 = vadd.f32 %v68, %v227
    %v229 = vpop.f32.mrb[0].mxu0
    %v230 = vadd.f32 %v72, %v229
    %231 = vmatprep.mubr.f32.mxu0 0.0
    %232 = vmatmul.mubr.f32.gmra.mrb[0].mxu0 %v82
    %v233 = vpop.f32.mrb[0].mxu0
    %v234 = vadd.f32 %v68, %v233
    %v235 = vpop.f32.mrb[0].mxu0
    %v236 = vadd.f32 %v72, %v235
    %237 = vdwg.mxu0
    %v238 = vmax.f32 %v151, 0.0
    %v239 = vmax.f32 %v153, 0.0
    %v240 = vmax.f32 %v228, 0.0
    %v241 = vmax.f32 %v230, 0.0
    %v242 = vmax.f32 %v157, 0.0
    %v243 = vmax.f32 %v159, 0.0
    %v244 = vmax.f32 %v234, 0.0
    %v245 = vmax.f32 %v236, 0.0
    %v246 = vld [vmem:[%s3] sm:$0xff]
    %v247 = vld [vmem:[%s3 + $0x8] sm:$0xff]
    %v248 = vld [vmem:[%s3 + $0x10] sm:$0xff]
    %v249 = vld [vmem:[%s3 + $0x18] sm:$0xff]
    %v250 = vld [vmem:[%s3 + $0x20] sm:$0xff]
    %v251 = vld [vmem:[%s3 + $0x28] sm:$0xff]
    %v252 = vld [vmem:[%s3 + $0x30] sm:$0xff]
    %v253 = vld [vmem:[%s3 + $0x38] sm:$0xff]
    %v254 = vld [vmem:[%s3 + $0x40] sm:$0xff]
    %v255 = vld [vmem:[%s3 + $0x48] sm:$0xff]
    %v256 = vld [vmem:[%s3 + $0x50] sm:$0xff]
    %v257 = vld [vmem:[%s3 + $0x58] sm:$0xff]
    %v258 = vld [vmem:[%s3 + $0x60] sm:$0xff]
    %v259 = vld [vmem:[%s3 + $0x68] sm:$0xff]
    %v260 = vld [vmem:[%s3 + $0x70] sm:$0xff]
    %v261 = vld [vmem:[%s3 + $0x78] sm:$0xff]
    %v262 = vld [vmem:[%s3 + $0x80] sm:$0xff]
    %v263 = vld [vmem:[%s3 + $0x88] sm:$0xff]
    %v264 = vld [vmem:[%s3 + $0x90] sm:$0xff]
    %v265 = vld [vmem:[%s3 + $0x98] sm:$0xff]
    %v266 = vld [vmem:[%s3 + $0xa0] sm:$0xff]
    %v267 = vld [vmem:[%s3 + $0xa8] sm:$0xff]
    %v268 = vld [vmem:[%s3 + $0xb0] sm:$0xff]
    %v269 = vld [vmem:[%s3 + $0xb8] sm:$0xff]
    %v270 = vld [vmem:[%s3 + $0xc0] sm:$0xff]
    %v271 = vld [vmem:[%s3 + $0xc8] sm:$0xff]
    %v272 = vld [vmem:[%s3 + $0xd0] sm:$0xff]
    %v273 = vld [vmem:[%s3 + $0xd8] sm:$0xff]
    %v274 = vld [vmem:[%s3 + $0xe0] sm:$0xff]
    %v275 = vld [vmem:[%s3 + $0xe8] sm:$0xff]
    %v276 = vld [vmem:[%s3 + $0xf0] sm:$0xff]
    %v277 = vld [vmem:[%s3 + $0xf8] sm:$0xff]
    %v278 = vld [vmem:[%s3 + $0x100] sm:$0xff]
    %v279 = vld [vmem:[%s3 + $0x108] sm:$0xff]
    %v280 = vld [vmem:[%s3 + $0x110] sm:$0xff]
    %v281 = vld [vmem:[%s3 + $0x118] sm:$0xff]
    %v282 = vld [vmem:[%s3 + $0x120] sm:$0xff]
    %v283 = vld [vmem:[%s3 + $0x128] sm:$0xff]
    %v284 = vld [vmem:[%s3 + $0x130] sm:$0xff]
    %v285 = vld [vmem:[%s3 + $0x138] sm:$0xff]
    %v286 = vld [vmem:[%s3 + $0x140] sm:$0xff]
    %v287 = vld [vmem:[%s3 + $0x148] sm:$0xff]
    %v288 = vld [vmem:[%s3 + $0x150] sm:$0xff]
    %v289 = vld [vmem:[%s3 + $0x158] sm:$0xff]
    %v290 = vld [vmem:[%s3 + $0x160] sm:$0xff]
    %v291 = vld [vmem:[%s3 + $0x168] sm:$0xff]
    %v292 = vld [vmem:[%s3 + $0x170] sm:$0xff]
    %v293 = vld [vmem:[%s3 + $0x178] sm:$0xff]
    %v294 = vld [vmem:[%s3 + $0x180] sm:$0xff]
    %v295 = vld [vmem:[%s3 + $0x188] sm:$0xff]
    %v296 = vld [vmem:[%s3 + $0x190] sm:$0xff]
    %v297 = vld [vmem:[%s3 + $0x198] sm:$0xff]
    %v298 = vld [vmem:[%s3 + $0x1a0] sm:$0xff]
    %v299 = vld [vmem:[%s3 + $0x1a8] sm:$0xff]
    %v300 = vld [vmem:[%s3 + $0x1b0] sm:$0xff]
    %v301 = vld [vmem:[%s3 + $0x1b8] sm:$0xff]
    %v302 = vld [vmem:[%s3 + $0x1c0] sm:$0xff]
    %v303 = vld [vmem:[%s3 + $0x1c8] sm:$0xff]
    %v304 = vld [vmem:[%s3 + $0x1d0] sm:$0xff]
    %v305 = vld [vmem:[%s3 + $0x1d8] sm:$0xff]
    %v306 = vld [vmem:[%s3 + $0x1e0] sm:$0xff]
    %v307 = vld [vmem:[%s3 + $0x1e8] sm:$0xff]
    %v308 = vld [vmem:[%s3 + $0x1f0] sm:$0xff]
    %v309 = vld [vmem:[%s3 + $0x1f8] sm:$0xff]
    %v310 = vld [vmem:[%s4] sm:$0x1]
    %v312 = vlaneseq
    %v313 = vshrl.u32 %v312, 7
    %v314 = vsub.s32 0, %v313
    %v315 = vrot.slane %v310, %v314
    %317 = vmatprep.subr.mxu0 0.0
    %318 = vmatpush1.msra.mxu0 %v246
    %319 = vmatprep.subr.mxu0 0.0
    %320 = vmatpush1.msra.mxu0 %v247
    %321 = vmatprep.subr.mxu0 0.0
    %322 = vmatpush1.msra.mxu0 %v248
    %323 = vmatprep.subr.mxu0 0.0
    %324 = vmatpush1.msra.mxu0 %v249
    %325 = vmatprep.subr.mxu0 0.0
    %326 = vmatpush1.msra.mxu0 %v250
    %327 = vmatprep.subr.mxu0 0.0
    %328 = vmatpush1.msra.mxu0 %v251
    %329 = vmatprep.subr.mxu0 0.0
    %330 = vmatpush1.msra.mxu0 %v252
    %331 = vmatprep.subr.mxu0 0.0
    %332 = vmatpush1.msra.mxu0 %v253
    %333 = vmatprep.subr.mxu0 0.0
    %334 = vmatpush1.msra.mxu0 %v254
    %335 = vmatprep.subr.mxu0 0.0
    %336 = vmatpush1.msra.mxu0 %v255
    %337 = vmatprep.subr.mxu0 0.0
    %338 = vmatpush1.msra.mxu0 %v256
    %339 = vmatprep.subr.mxu0 0.0
    %340 = vmatpush1.msra.mxu0 %v257
    %341 = vmatprep.subr.mxu0 0.0
    %342 = vmatpush1.msra.mxu0 %v258
    %343 = vmatprep.subr.mxu0 0.0
    %344 = vmatpush1.msra.mxu0 %v259
    %345 = vmatprep.subr.mxu0 0.0
    %346 = vmatpush1.msra.mxu0 %v260
    %347 = vmatprep.subr.mxu0 0.0
    %348 = vmatpush1.msra.mxu0 %v261
    %349 = vmatprep.subr.mxu0 0.0
    %350 = vmatpush1.msra.mxu0 %v262
    %351 = vmatprep.subr.mxu0 0.0
    %352 = vmatpush1.msra.mxu0 %v263
    %353 = vmatprep.subr.mxu0 0.0
    %354 = vmatpush1.msra.mxu0 %v264
    %355 = vmatprep.subr.mxu0 0.0
    %356 = vmatpush1.msra.mxu0 %v265
    %357 = vmatprep.subr.mxu0 0.0
    %358 = vmatpush1.msra.mxu0 %v266
    %359 = vmatprep.subr.mxu0 0.0
    %360 = vmatpush1.msra.mxu0 %v267
    %361 = vmatprep.subr.mxu0 0.0
    %362 = vmatpush1.msra.mxu0 %v268
    %363 = vmatprep.subr.mxu0 0.0
    %364 = vmatpush1.msra.mxu0 %v269
    %365 = vmatprep.subr.mxu0 0.0
    %366 = vmatpush1.msra.mxu0 %v270
    %367 = vmatprep.subr.mxu0 0.0
    %368 = vmatpush1.msra.mxu0 %v271
    %369 = vmatprep.subr.mxu0 0.0
    %370 = vmatpush1.msra.mxu0 %v272
    %371 = vmatprep.subr.mxu0 0.0
    %372 = vmatpush1.msra.mxu0 %v273
    %373 = vmatprep.subr.mxu0 0.0
    %374 = vmatpush1.msra.mxu0 %v274
    %375 = vmatprep.subr.mxu0 0.0
    %376 = vmatpush1.msra.mxu0 %v275
    %377 = vmatprep.subr.mxu0 0.0
    %378 = vmatpush1.msra.mxu0 %v276
    %379 = vmatprep.subr.mxu0 0.0
    %380 = vmatpush1.msra.mxu0 %v277
    %381 = vmatprep.mubr.f32.mxu0 %v239
    %382 = vmatmul.mubr.f32.gmra.mrb[0].mxu0 %v238
    %v383 = vpop.f32.mrb[0].mxu0
    %v384 = vadd.f32 %v315, %v383
    %v385 = vpop.f32.mrb[0].mxu0
    %386 = vmatprep.mubr.f32.mxu0 %v243
    %387 = vmatmul.mubr.f32.gmra.mrb[0].mxu0 %v242
    %v388 = vpop.f32.mrb[0].mxu0
    %v389 = vadd.f32 %v315, %v388
    %v390 = vpop.f32.mrb[0].mxu0
    %391 = vdwg.mxu0
    %392 = vmatprep.subr.mxu0 0.0
    %393 = vmatpush1.msra.mxu0 %v278
    %394 = vmatprep.subr.mxu0 0.0
    %395 = vmatpush1.msra.mxu0 %v279
    %396 = vmatprep.subr.mxu0 0.0
    %397 = vmatpush1.msra.mxu0 %v280
    %398 = vmatprep.subr.mxu0 0.0
    %399 = vmatpush1.msra.mxu0 %v281
    %400 = vmatprep.subr.mxu0 0.0
    %401 = vmatpush1.msra.mxu0 %v282
    %402 = vmatprep.subr.mxu0 0.0
    %403 = vmatpush1.msra.mxu0 %v283
    %404 = vmatprep.subr.mxu0 0.0
    %405 = vmatpush1.msra.mxu0 %v284
    %406 = vmatprep.subr.mxu0 0.0
    %407 = vmatpush1.msra.mxu0 %v285
    %408 = vmatprep.subr.mxu0 0.0
    %409 = vmatpush1.msra.mxu0 %v286
    %410 = vmatprep.subr.mxu0 0.0
    %411 = vmatpush1.msra.mxu0 %v287
    %412 = vmatprep.subr.mxu0 0.0
    %413 = vmatpush1.msra.mxu0 %v288
    %414 = vmatprep.subr.mxu0 0.0
    %415 = vmatpush1.msra.mxu0 %v289
    %416 = vmatprep.subr.mxu0 0.0
    %417 = vmatpush1.msra.mxu0 %v290
    %418 = vmatprep.subr.mxu0 0.0
    %419 = vmatpush1.msra.mxu0 %v291
    %420 = vmatprep.subr.mxu0 0.0
    %421 = vmatpush1.msra.mxu0 %v292
    %422 = vmatprep.subr.mxu0 0.0
    %423 = vmatpush1.msra.mxu0 %v293
    %424 = vmatprep.subr.mxu0 0.0
    %425 = vmatpush1.msra.mxu0 %v294
    %426 = vmatprep.subr.mxu0 0.0
    %427 = vmatpush1.msra.mxu0 %v295
    %428 = vmatprep.subr.mxu0 0.0
    %429 = vmatpush1.msra.mxu0 %v296
    %430 = vmatprep.subr.mxu0 0.0
    %431 = vmatpush1.msra.mxu0 %v297
    %432 = vmatprep.subr.mxu0 0.0
    %433 = vmatpush1.msra.mxu0 %v298
    %434 = vmatprep.subr.mxu0 0.0
    %435 = vmatpush1.msra.mxu0 %v299
    %436 = vmatprep.subr.mxu0 0.0
    %437 = vmatpush1.msra.mxu0 %v300
    %438 = vmatprep.subr.mxu0 0.0
    %439 = vmatpush1.msra.mxu0 %v301
    %440 = vmatprep.subr.mxu0 0.0
    %441 = vmatpush1.msra.mxu0 %v302
    %442 = vmatprep.subr.mxu0 0.0
    %443 = vmatpush1.msra.mxu0 %v303
    %444 = vmatprep.subr.mxu0 0.0
    %445 = vmatpush1.msra.mxu0 %v304
    %446 = vmatprep.subr.mxu0 0.0
    %447 = vmatpush1.msra.mxu0 %v305
    %448 = vmatprep.subr.mxu0 0.0
    %449 = vmatpush1.msra.mxu0 %v306
    %450 = vmatprep.subr.mxu0 0.0
    %451 = vmatpush1.msra.mxu0 %v307
    %452 = vmatprep.subr.mxu0 0.0
    %453 = vmatpush1.msra.mxu0 %v308
    %454 = vmatprep.subr.mxu0 0.0
    %455 = vmatpush1.msra.mxu0 %v309
    %456 = vmatprep.mubr.f32.mxu0 %v241
    %457 = vmatmul.mubr.f32.gmra.mrb[0].mxu0 %v240
    %v458 = vpop.f32.mrb[0].mxu0
    %v459 = vadd.f32 %v384, %v458
    %v460 = vpop.f32.mrb[0].mxu0
    %461 = vmatprep.mubr.f32.mxu0 %v245
    %462 = vmatmul.mubr.f32.gmra.mrb[0].mxu0 %v244
    %v463 = vpop.f32.mrb[0].mxu0
    %v464 = vadd.f32 %v389, %v463
    %v465 = vpop.f32.mrb[0].mxu0
    %466 = vdwg.mxu0
    %467 = vst.msk [vmem:[#allocation2] sm:$0xff] %vm77, %v459
    %468 = vst.msk [vmem:[#allocation2 + $0x8] sm:$0xff] %vm77, %v464
    // Predicated region
    $region22: #{tpu_custom_call.1} parent=1 // pred_check
      _
    $region23: #{tpu_custom_call.1} parent=1 // pred_check_branch
      %470 = sbr.rel (0) target = $region25
    $region24: #{tpu_custom_call.1} parent=1 // pred_region
      %s472 = ssub.s32 256, 256
      %473 = vsyncadd [#allocation3], %s472
      %s474 = sshll.u32 [#allocation2], 4
      %s475 = int_to_ptr.vmem [resolvable:$true] %s474
      %480 = dma.vmem_to_hbm [thread:$0]  %s475, 256, %s5, [#allocation3], 128, 128, 8
    $region25: #{tpu_custom_call.1} parent=1 // pred_fallthru
      _
    // Predicated region
    $region26: #{tpu_custom_call.1} parent=1 // pred_check
      _
    $region27: #{tpu_custom_call.1} parent=1 // pred_check_branch
      %482 = sbr.rel (0) target = $region29
    $region28: #{tpu_custom_call.1} parent=1 // pred_region
      %483 = dma.done [#allocation3], 256
    $region29: #{tpu_custom_call.1} parent=1 // pred_fallthru
      _
    %484 = vsyncpa [#allocation3], 1

</llo_original>
